<compile_context>
chip_gen: v7x
topology: tpu7x:2x2x1
jax: 0.10.0
libtpu: 0.0.40
codegen_flags: <defaults>
</compile_context>

<pallas_src>
import functools
import math

import jax
import jax.numpy as jnp
from jax.experimental import pallas as pl
from jax.experimental.pallas import tpu as pltpu

LANE = 128      # vreg lane width  (last dim)
SUBLANE = 8     # vreg sublane width (second-to-last dim)


def _round_up(x, m):
    return ((x + m - 1) // m) * m


# ----------------------------------------------------------------------------
# Kernel: fused Linear(+bias)(+ReLU) chain on lane-padded VMEM tiles.
# Ref order: x, w_0..w_{L-1}, b_0..b_{L-1}, out
# ----------------------------------------------------------------------------
def _ae_fused_kernel(*refs, n_layers, relu_flags):
    x_ref = refs[0]
    w_refs = refs[1:1 + n_layers]
    b_refs = refs[1 + n_layers:1 + 2 * n_layers]
    o_ref = refs[1 + 2 * n_layers]

    h = x_ref[...]                                         # (Bt, Kp0) f32
    for i in range(n_layers):                              # static unrolled chain
        y = jnp.dot(h, w_refs[i][...], preferred_element_type=jnp.float32)
        y = y + b_refs[i][...]                             # (1, Np_i) broadcast once
        if relu_flags[i]:
            y = jnp.maximum(y, 0.0)
        h = y
    o_ref[...] = h.astype(o_ref.dtype)


# ----------------------------------------------------------------------------
# Parameter init (matches nn.Linear defaults: U(-k, k), k = 1/sqrt(fan_in)).
# Each weight stored transposed [Din, Dout] and zero-padded ONLY to its own
# 128-rounded dims; bias padded to [1, Dout_pad].  Done once at init.
# ----------------------------------------------------------------------------
def _layer_specs(layer_dims):
    specs = []
    # Encoder: Linear + ReLU on every transition.
    for i in range(len(layer_dims) - 1):
        specs.append((layer_dims[i], layer_dims[i + 1], True))
    # Decoder: reversed dims; ReLU on all but the last layer.
    rev = layer_dims[::-1]
    for i in range(len(rev) - 1):
        specs.append((rev[i], rev[i + 1], i < len(rev) - 2))
    return specs


def init_ae_params(key, layer_dims):
    specs = _layer_specs(layer_dims)

    ws, bs, relu_flags, raw = [], [], [], []
    for din, dout, relu in specs:
        key, kw, kb = jax.random.split(key, 3)
        k = 1.0 / math.sqrt(din)
        w = jax.random.uniform(kw, (dout, din), jnp.float32, -k, k)  # torch (out, in)
        b = jax.random.uniform(kb, (dout,), jnp.float32, -k, k)
        kp = _round_up(din, LANE)          # contraction dim of this layer
        np_ = _round_up(dout, LANE)        # output dim of this layer
        ws.append(jnp.zeros((kp, np_), jnp.float32).at[:din, :dout].set(w.T))
        bs.append(jnp.zeros((1, np_), jnp.float32).at[0, :dout].set(b))
        relu_flags.append(relu)
        raw.append((w.T, b, relu))

    return {
        "w": tuple(ws),                    # per-layer (Kp_i, Np_i); Kp_{i+1} == Np_i
        "b": tuple(bs),                    # per-layer (1, Np_i)
        "relu_flags": tuple(relu_flags),
        "raw": raw,                        # unpadded, for the reference check
    }


# ----------------------------------------------------------------------------
# Forward wrapper: one pallas_call, 1-D grid over batch tiles.
# ----------------------------------------------------------------------------
def ae_forward(x, ws, bs, *, relu_flags, out_dim, max_batch_tile=256):
    B, Din = x.shape
    L = len(ws)
    Kp0 = ws[0].shape[0]
    Np_last = ws[-1].shape[1]

    Bt = min(_round_up(B, SUBLANE), max_batch_tile)
    Bp = _round_up(B, Bt)

    # Zero-pad activations to a lane/sublane-dense slab (zeros are inert:
    # padded weight rows/cols and padded bias lanes are zero, so the valid
    # region of the result is exact).
    x_pad = jnp.zeros((Bp, Kp0), x.dtype).at[:B, :Din].set(x)

    grid = (Bp // Bt,)

    in_specs = [pl.BlockSpec((Bt, Kp0), lambda m: (m, 0))]
    for w in ws:   # constant block index -> resident in VMEM across all tiles
        in_specs.append(pl.BlockSpec(w.shape, lambda m: (0, 0)))
    for b in bs:
        in_specs.append(pl.BlockSpec(b.shape, lambda m: (0, 0)))
    out_spec = pl.BlockSpec((Bt, Np_last), lambda m: (m, 0))

    flops = 2 * Bp * sum(int(w.shape[0]) * int(w.shape[1]) for w in ws)
    bytes_accessed = 4 * (
        Bp * Kp0 + Bp * Np_last
        + sum(int(w.size) for w in ws) + sum(int(b.size) for b in bs)
    )

    out_pad = pl.pallas_call(
        functools.partial(_ae_fused_kernel, n_layers=L, relu_flags=relu_flags),
        out_shape=jax.ShapeDtypeStruct((Bp, Np_last), x.dtype),
        grid=grid,
        in_specs=in_specs,
        out_specs=out_spec,
        compiler_params=pltpu.CompilerParams(
            dimension_semantics=("parallel",)),
        cost_estimate=pl.CostEstimate(
            flops=flops, transcendentals=0, bytes_accessed=bytes_accessed),
    )(x_pad, *ws, *bs)

    return out_pad[:B, :out_dim]


if __name__ == "__main__":
    layer_dims = [32, 16, 8]   # AE(layer_dims)
    batch = 8

    key = jax.random.PRNGKey(0)
    key, kx = jax.random.split(key)
    x = jax.random.normal(kx, (batch, layer_dims[0]), jnp.float32)

    params = init_ae_params(key, layer_dims)

    fwd = jax.jit(
        functools.partial(
            ae_forward,
            relu_flags=params["relu_flags"],
            out_dim=layer_dims[0],
        )
    )
    out = fwd(x, params["w"], params["b"])
    out = jax.block_until_ready(out)

    # Pure-JAX reference of the same forward pass (unpadded f32 weights).
    def ref_forward(x, layers):
        h = x
        for w_t, b, relu in layers:
            h = h @ w_t + b
            if relu:
                h = jnp.maximum(h, 0.0)
        return h

    ref = ref_forward(x, params["raw"])
    assert out.shape == (batch, layer_dims[0])
    assert jnp.allclose(out, ref, atol=1e-5, rtol=1e-5)

    print("KERNEL_OK")
</pallas_src>

<mosaic_0001>
module attributes {stable_mosaic.version = 11 : i64} {
  func.func @_ae_fused_kernel(%arg0: i32, %arg1: memref<8x128xf32, #tpu.memory_space<vmem>>, %arg2: memref<128x128xf32, #tpu.memory_space<vmem>>, %arg3: memref<128x128xf32, #tpu.memory_space<vmem>>, %arg4: memref<128x128xf32, #tpu.memory_space<vmem>>, %arg5: memref<128x128xf32, #tpu.memory_space<vmem>>, %arg6: memref<1x128xf32, #tpu.memory_space<vmem>>, %arg7: memref<1x128xf32, #tpu.memory_space<vmem>>, %arg8: memref<1x128xf32, #tpu.memory_space<vmem>>, %arg9: memref<1x128xf32, #tpu.memory_space<vmem>>, %arg10: memref<8x128xf32, #tpu.memory_space<vmem>>) attributes {dimension_semantics = [#tpu.dimension_semantics<parallel>], iteration_bounds = array<i64: 1>, scalar_prefetch = 0 : i64, scratch_operands = 0 : i64, tpu.core_type = #tpu.core_type<tc>, window_params = [{transform_indices = @transform_0, window_bounds = array<i64: 8, 128>}, {pipeline_mode = #tpu.pipeline_mode<synchronous>, transform_indices = @transform_1, window_bounds = array<i64: 128, 128>}, {pipeline_mode = #tpu.pipeline_mode<synchronous>, transform_indices = @transform_2, window_bounds = array<i64: 128, 128>}, {pipeline_mode = #tpu.pipeline_mode<synchronous>, transform_indices = @transform_3, window_bounds = array<i64: 128, 128>}, {pipeline_mode = #tpu.pipeline_mode<synchronous>, transform_indices = @transform_4, window_bounds = array<i64: 128, 128>}, {pipeline_mode = #tpu.pipeline_mode<synchronous>, transform_indices = @transform_5, window_bounds = array<i64: 1, 128>}, {pipeline_mode = #tpu.pipeline_mode<synchronous>, transform_indices = @transform_6, window_bounds = array<i64: 1, 128>}, {pipeline_mode = #tpu.pipeline_mode<synchronous>, transform_indices = @transform_7, window_bounds = array<i64: 1, 128>}, {pipeline_mode = #tpu.pipeline_mode<synchronous>, transform_indices = @transform_8, window_bounds = array<i64: 1, 128>}, {transform_indices = @transform_9, window_bounds = array<i64: 8, 128>}]} {
    %c0 = arith.constant 0 : index
    %c0_0 = arith.constant 0 : index
    %0 = vector.load %arg1[%c0, %c0_0] : memref<8x128xf32, #tpu.memory_space<vmem>>, vector<8x128xf32>
    %c0_1 = arith.constant 0 : index
    %c0_2 = arith.constant 0 : index
    %1 = vector.load %arg2[%c0_1, %c0_2] : memref<128x128xf32, #tpu.memory_space<vmem>>, vector<128x128xf32>
    %cst = arith.constant dense<0.000000e+00> : vector<8x128xf32>
    %2 = tpu.matmul %0, %1, %cst {dimension_numbers = #tpu.dot_dimension_numbers<[1], [0], [0], [1], [0, 0, 1, 1], [], []>} : vector<8x128xf32>, vector<128x128xf32>, vector<8x128xf32> -> vector<8x128xf32>
    %c0_3 = arith.constant 0 : index
    %c0_4 = arith.constant 0 : index
    %3 = vector.load %arg6[%c0_3, %c0_4] : memref<1x128xf32, #tpu.memory_space<vmem>>, vector<1x128xf32>
    %4 = vector.broadcast %3 : vector<1x128xf32> to vector<8x128xf32>
    %5 = arith.addf %2, %4 : vector<8x128xf32>
    %cst_5 = arith.constant 0.000000e+00 : f32
    %6 = vector.broadcast %cst_5 : f32 to vector<8x128xf32>
    %7 = arith.maximumf %5, %6 : vector<8x128xf32>
    %c0_6 = arith.constant 0 : index
    %c0_7 = arith.constant 0 : index
    %8 = vector.load %arg3[%c0_6, %c0_7] : memref<128x128xf32, #tpu.memory_space<vmem>>, vector<128x128xf32>
    %cst_8 = arith.constant dense<0.000000e+00> : vector<8x128xf32>
    %9 = tpu.matmul %7, %8, %cst_8 {dimension_numbers = #tpu.dot_dimension_numbers<[1], [0], [0], [1], [0, 0, 1, 1], [], []>} : vector<8x128xf32>, vector<128x128xf32>, vector<8x128xf32> -> vector<8x128xf32>
    %c0_9 = arith.constant 0 : index
    %c0_10 = arith.constant 0 : index
    %10 = vector.load %arg7[%c0_9, %c0_10] : memref<1x128xf32, #tpu.memory_space<vmem>>, vector<1x128xf32>
    %11 = vector.broadcast %10 : vector<1x128xf32> to vector<8x128xf32>
    %12 = arith.addf %9, %11 : vector<8x128xf32>
    %cst_11 = arith.constant 0.000000e+00 : f32
    %13 = vector.broadcast %cst_11 : f32 to vector<8x128xf32>
    %14 = arith.maximumf %12, %13 : vector<8x128xf32>
    %c0_12 = arith.constant 0 : index
    %c0_13 = arith.constant 0 : index
    %15 = vector.load %arg4[%c0_12, %c0_13] : memref<128x128xf32, #tpu.memory_space<vmem>>, vector<128x128xf32>
    %cst_14 = arith.constant dense<0.000000e+00> : vector<8x128xf32>
    %16 = tpu.matmul %14, %15, %cst_14 {dimension_numbers = #tpu.dot_dimension_numbers<[1], [0], [0], [1], [0, 0, 1, 1], [], []>} : vector<8x128xf32>, vector<128x128xf32>, vector<8x128xf32> -> vector<8x128xf32>
    %c0_15 = arith.constant 0 : index
    %c0_16 = arith.constant 0 : index
    %17 = vector.load %arg8[%c0_15, %c0_16] : memref<1x128xf32, #tpu.memory_space<vmem>>, vector<1x128xf32>
    %18 = vector.broadcast %17 : vector<1x128xf32> to vector<8x128xf32>
    %19 = arith.addf %16, %18 : vector<8x128xf32>
    %cst_17 = arith.constant 0.000000e+00 : f32
    %20 = vector.broadcast %cst_17 : f32 to vector<8x128xf32>
    %21 = arith.maximumf %19, %20 : vector<8x128xf32>
    %c0_18 = arith.constant 0 : index
    %c0_19 = arith.constant 0 : index
    %22 = vector.load %arg5[%c0_18, %c0_19] : memref<128x128xf32, #tpu.memory_space<vmem>>, vector<128x128xf32>
    %cst_20 = arith.constant dense<0.000000e+00> : vector<8x128xf32>
    %23 = tpu.matmul %21, %22, %cst_20 {dimension_numbers = #tpu.dot_dimension_numbers<[1], [0], [0], [1], [0, 0, 1, 1], [], []>} : vector<8x128xf32>, vector<128x128xf32>, vector<8x128xf32> -> vector<8x128xf32>
    %c0_21 = arith.constant 0 : index
    %c0_22 = arith.constant 0 : index
    %24 = vector.load %arg9[%c0_21, %c0_22] : memref<1x128xf32, #tpu.memory_space<vmem>>, vector<1x128xf32>
    %25 = vector.broadcast %24 : vector<1x128xf32> to vector<8x128xf32>
    %26 = arith.addf %23, %25 : vector<8x128xf32>
    %c0_23 = arith.constant 0 : index
    %c0_24 = arith.constant 0 : index
    %27 = vector.load %arg10[%c0_23, %c0_24] : memref<8x128xf32, #tpu.memory_space<vmem>>, vector<8x128xf32>
    tpu.vector_store %arg10[%c0_23, %c0_24], %26 {strides = array<i32>} : memref<8x128xf32, #tpu.memory_space<vmem>>, vector<8x128xf32>,
    return
  }
  func.func @transform_0(%arg0: i32) -> (i32, i32) {
    %c0_i32 = arith.constant 0 : i32
    %c0_i32_0 = arith.constant 0 : i32
    return %arg0, %c0_i32 : i32, i32
  }
  func.func @transform_1(%arg0: i32) -> (i32, i32) {
    %c0_i32 = arith.constant 0 : i32
    %c0_i32_0 = arith.constant 0 : i32
    %c0_i32_1 = arith.constant 0 : i32
    return %c0_i32, %c0_i32_0 : i32, i32
  }
  func.func @transform_2(%arg0: i32) -> (i32, i32) {
    %c0_i32 = arith.constant 0 : i32
    %c0_i32_0 = arith.constant 0 : i32
    %c0_i32_1 = arith.constant 0 : i32
    return %c0_i32, %c0_i32_0 : i32, i32
  }
  func.func @transform_3(%arg0: i32) -> (i32, i32) {
    %c0_i32 = arith.constant 0 : i32
    %c0_i32_0 = arith.constant 0 : i32
    %c0_i32_1 = arith.constant 0 : i32
    return %c0_i32, %c0_i32_0 : i32, i32
  }
  func.func @transform_4(%arg0: i32) -> (i32, i32) {
    %c0_i32 = arith.constant 0 : i32
    %c0_i32_0 = arith.constant 0 : i32
    %c0_i32_1 = arith.constant 0 : i32
    return %c0_i32, %c0_i32_0 : i32, i32
  }
  func.func @transform_5(%arg0: i32) -> (i32, i32) {
    %c0_i32 = arith.constant 0 : i32
    %c0_i32_0 = arith.constant 0 : i32
    %c0_i32_1 = arith.constant 0 : i32
    return %c0_i32, %c0_i32_0 : i32, i32
  }
  func.func @transform_6(%arg0: i32) -> (i32, i32) {
    %c0_i32 = arith.constant 0 : i32
    %c0_i32_0 = arith.constant 0 : i32
    %c0_i32_1 = arith.constant 0 : i32
    return %c0_i32, %c0_i32_0 : i32, i32
  }
  func.func @transform_7(%arg0: i32) -> (i32, i32) {
    %c0_i32 = arith.constant 0 : i32
    %c0_i32_0 = arith.constant 0 : i32
    %c0_i32_1 = arith.constant 0 : i32
    return %c0_i32, %c0_i32_0 : i32, i32
  }
  func.func @transform_8(%arg0: i32) -> (i32, i32) {
    %c0_i32 = arith.constant 0 : i32
    %c0_i32_0 = arith.constant 0 : i32
    %c0_i32_1 = arith.constant 0 : i32
    return %c0_i32, %c0_i32_0 : i32, i32
  }
  func.func @transform_9(%arg0: i32) -> (i32, i32) {
    %c0_i32 = arith.constant 0 : i32
    %c0_i32_0 = arith.constant 0 : i32
    return %arg0, %c0_i32 : i32, i32
  }
}

</mosaic_0001>

<llo_original>
// kernel: ae_forward.1
$region0: #{ae_forward.1}
  #allocation0 [shape = 'u32[]', space=smem, size = 0x4, offset = 0x4, fixed_abs, tag = 'smem constant byte address 0x4 - core index']
  #allocation1 [shape = 'u32[144,128]{1,0:T(1,128)}', space=vmem, size = 0x12000, scoped, tag = 'internal scratch']
  %s0 = inlined_call_operand.vmem [shape: f32[8,128], index: 0, kind: input, shape index: {}]
  %s1 = inlined_call_operand.hbm [shape: f32[128,128], index: 1, kind: input, shape index: {}]
  %s2 = inlined_call_operand.hbm [shape: f32[128,128], index: 2, kind: input, shape index: {}]
  %s3 = inlined_call_operand.hbm [shape: f32[128,128], index: 3, kind: input, shape index: {}]
  %s4 = inlined_call_operand.hbm [shape: f32[128,128], index: 4, kind: input, shape index: {}]
  %s5 = inlined_call_operand.vmem [shape: f32[1,128], index: 5, kind: input, shape index: {}]
  %s6 = inlined_call_operand.vmem [shape: f32[1,128], index: 6, kind: input, shape index: {}]
  %s7 = inlined_call_operand.vmem [shape: f32[1,128], index: 7, kind: input, shape index: {}]
  %s8 = inlined_call_operand.vmem [shape: f32[1,128], index: 8, kind: input, shape index: {}]
  %s9 = inlined_call_operand.hbm [shape: f32[8,128], index: 9, kind: output, shape index: {}]
  %s10 = sld [smem:[#allocation0]]
  $region62: #{ae_forward.1} parent=0
    _
  %s12 = ssub.s32 1, %s10
  %s13 = scalar_select 0, %s12, %s10
  $region1: #{ae_forward.1} parent=0
    #allocation2 [shape = 'u8[65536]{0}', space=vmem, size = 0x10000, scoped, tag = 'input window, operand 1, single buffered']
    #allocation3 [shape = 's32[1]{0}', space=sflag, size = 0x4, scoped, tag = 'scoped memory for ae_forward.1']
    #allocation4 [shape = 's32[1]{0}', space=sflag, size = 0x4, scoped, tag = 'scoped memory for ae_forward.1']
    #allocation5 [shape = 'u8[65536]{0}', space=vmem, size = 0x10000, scoped, tag = 'input window, operand 2, single buffered']
    #allocation6 [shape = 's32[1]{0}', space=sflag, size = 0x4, scoped, tag = 'scoped memory for ae_forward.1']
    #allocation7 [shape = 'u8[65536]{0}', space=vmem, size = 0x10000, scoped, tag = 'input window, operand 3, single buffered']
    #allocation8 [shape = 'u8[65536]{0}', space=vmem, size = 0x10000, scoped, tag = 'input window, operand 4, single buffered']
    #allocation9 [shape = 's32[1]{0}', space=sflag, size = 0x4, scoped, tag = 'scoped memory for ae_forward.1']
    #allocation10 [shape = 'u8[4096]{0}', space=vmem, size = 0x1000, scoped, tag = 'output window, operand 0, single buffered']
    %14 = vsyncpa [#allocation3], 0
    %15 = vsyncpa [#allocation6], 0
    %16 = vsyncpa [#allocation9], 0
    %17 = vsyncpa [#allocation4], 0
    // Predicated region
    $region2: #{ae_forward.1} parent=1 // pred_check
      _
    $region3: #{ae_forward.1} parent=1 // pred_check_branch
      %19 = sbr.rel (0) target = $region5
    $region4: #{ae_forward.1} parent=1 // pred_region
      _
    $region5: #{ae_forward.1} parent=1 // pred_fallthru
      _
    // Predicated region
    $region6: #{ae_forward.1} parent=1 // pred_check
      _
    $region7: #{ae_forward.1} parent=1 // pred_check_branch
      %21 = sbr.rel (0) target = $region9
    $region8: #{ae_forward.1} parent=1 // pred_region
      %s23 = ssub.s32 2048, 2048
      %24 = vsyncadd [#allocation3], %s23
      %s25 = sshll.u32 [#allocation2], 4
      %s26 = int_to_ptr.vmem [resolvable:$true] %s25
      %31 = dma.hbm_to_vmem [thread:$0]  %s1, 2048, %s26, [#allocation3], 128, 128, 8
    $region9: #{ae_forward.1} parent=1 // pred_fallthru
      _
    // Predicated region
    $region10: #{ae_forward.1} parent=1 // pred_check
      _
    $region11: #{ae_forward.1} parent=1 // pred_check_branch
      %33 = sbr.rel (0) target = $region13
    $region12: #{ae_forward.1} parent=1 // pred_region
      %s35 = ssub.s32 2048, 2048
      %36 = vsyncadd [#allocation6], %s35
      %s37 = sshll.u32 [#allocation5], 4
      %s38 = int_to_ptr.vmem [resolvable:$true] %s37
      %43 = dma.hbm_to_vmem [thread:$0]  %s2, 2048, %s38, [#allocation6], 128, 128, 8
    $region13: #{ae_forward.1} parent=1 // pred_fallthru
      _
    // Predicated region
    $region14: #{ae_forward.1} parent=1 // pred_check
      _
    $region15: #{ae_forward.1} parent=1 // pred_check_branch
      %45 = sbr.rel (0) target = $region17
    $region16: #{ae_forward.1} parent=1 // pred_region
      %s47 = ssub.s32 2048, 2048
      %48 = vsyncadd [#allocation6], %s47
      %s49 = sshll.u32 [#allocation7], 4
      %s50 = int_to_ptr.vmem [resolvable:$true] %s49
      %55 = dma.hbm_to_vmem [thread:$0]  %s3, 2048, %s50, [#allocation6], 128, 128, 8
    $region17: #{ae_forward.1} parent=1 // pred_fallthru
      _
    // Predicated region
    $region18: #{ae_forward.1} parent=1 // pred_check
      _
    $region19: #{ae_forward.1} parent=1 // pred_check_branch
      %57 = sbr.rel (0) target = $region21
    $region20: #{ae_forward.1} parent=1 // pred_region
      %s59 = ssub.s32 2048, 2048
      %60 = vsyncadd [#allocation9], %s59
      %s61 = sshll.u32 [#allocation8], 4
      %s62 = int_to_ptr.vmem [resolvable:$true] %s61
      %67 = dma.hbm_to_vmem [thread:$0]  %s4, 2048, %s62, [#allocation9], 128, 128, 8
    $region21: #{ae_forward.1} parent=1 // pred_fallthru
      _
    // Predicated region
    $region22: #{ae_forward.1} parent=1 // pred_check
      _
    $region23: #{ae_forward.1} parent=1 // pred_check_branch
      %69 = sbr.rel (0) target = $region25
    $region24: #{ae_forward.1} parent=1 // pred_region
      _
    $region25: #{ae_forward.1} parent=1 // pred_fallthru
      _
    // Predicated region
    $region26: #{ae_forward.1} parent=1 // pred_check
      _
    $region27: #{ae_forward.1} parent=1 // pred_check_branch
      %71 = sbr.rel (0) target = $region29
    $region28: #{ae_forward.1} parent=1 // pred_region
      _
    $region29: #{ae_forward.1} parent=1 // pred_fallthru
      _
    // Predicated region
    $region30: #{ae_forward.1} parent=1 // pred_check
      _
    $region31: #{ae_forward.1} parent=1 // pred_check_branch
      %73 = sbr.rel (0) target = $region33
    $region32: #{ae_forward.1} parent=1 // pred_region
      _
    $region33: #{ae_forward.1} parent=1 // pred_fallthru
      _
    // Predicated region
    $region34: #{ae_forward.1} parent=1 // pred_check
      _
    $region35: #{ae_forward.1} parent=1 // pred_check_branch
      %75 = sbr.rel (0) target = $region37
    $region36: #{ae_forward.1} parent=1 // pred_region
      _
    $region37: #{ae_forward.1} parent=1 // pred_fallthru
      _
    // Predicated region
    $region38: #{ae_forward.1} parent=1 // pred_check
      _
    $region39: #{ae_forward.1} parent=1 // pred_check_branch
      %77 = sbr.rel (0) target = $region41
    $region40: #{ae_forward.1} parent=1 // pred_region
      %78 = dma.done [#allocation3], 2048
    $region41: #{ae_forward.1} parent=1 // pred_fallthru
      _
    // Predicated region
    $region42: #{ae_forward.1} parent=1 // pred_check
      _
    $region43: #{ae_forward.1} parent=1 // pred_check_branch
      %80 = sbr.rel (0) target = $region45
    $region44: #{ae_forward.1} parent=1 // pred_region
      %81 = dma.done [#allocation6], 2048
    $region45: #{ae_forward.1} parent=1 // pred_fallthru
      _
    // Predicated region
    $region46: #{ae_forward.1} parent=1 // pred_check
      _
    $region47: #{ae_forward.1} parent=1 // pred_check_branch
      %83 = sbr.rel (0) target = $region49
    $region48: #{ae_forward.1} parent=1 // pred_region
      %84 = dma.done [#allocation6], 2048
    $region49: #{ae_forward.1} parent=1 // pred_fallthru
      _
    // Predicated region
    $region50: #{ae_forward.1} parent=1 // pred_check
      _
    $region51: #{ae_forward.1} parent=1 // pred_check_branch
      %86 = sbr.rel (0) target = $region53
    $region52: #{ae_forward.1} parent=1 // pred_region
      %87 = dma.done [#allocation9], 2048
    $region53: #{ae_forward.1} parent=1 // pred_fallthru
      _
    %v88 = vld [vmem:[%s0] sm:$0xff]
    %v89 = vld [vmem:[#allocation2] sm:$0xff]
    %v90 = vld [vmem:[#allocation2 + $0x8] sm:$0xff]
    %v91 = vld [vmem:[#allocation2 + $0x10] sm:$0xff]
    %v92 = vld [vmem:[#allocation2 + $0x18] sm:$0xff]
    %v93 = vld [vmem:[#allocation2 + $0x20] sm:$0xff]
    %v94 = vld [vmem:[#allocation2 + $0x28] sm:$0xff]
    %v95 = vld [vmem:[#allocation2 + $0x30] sm:$0xff]
    %v96 = vld [vmem:[#allocation2 + $0x38] sm:$0xff]
    %v97 = vld [vmem:[#allocation2 + $0x40] sm:$0xff]
    %v98 = vld [vmem:[#allocation2 + $0x48] sm:$0xff]
    %v99 = vld [vmem:[#allocation2 + $0x50] sm:$0xff]
    %v100 = vld [vmem:[#allocation2 + $0x58] sm:$0xff]
    %v101 = vld [vmem:[#allocation2 + $0x60] sm:$0xff]
    %v102 = vld [vmem:[#allocation2 + $0x68] sm:$0xff]
    %v103 = vld [vmem:[#allocation2 + $0x70] sm:$0xff]
    %v104 = vld [vmem:[#allocation2 + $0x78] sm:$0xff]
    %v105 = vld [vmem:[%s5] sm:$0x1]
    %v107 = vlaneseq
    %v108 = vshrl.u32 %v107, 7
    %v109 = vsub.s32 0, %v108
    %v110 = vrot.slane %v105, %v109
    %112 = vmatprep.subr.mxu0 0.0
    %113 = vmatpush1.msra.mxu0 %v89
    %114 = vmatprep.subr.mxu0 0.0
    %115 = vmatpush1.msra.mxu0 %v90
    %116 = vmatprep.subr.mxu0 0.0
    %117 = vmatpush1.msra.mxu0 %v91
    %118 = vmatprep.subr.mxu0 0.0
    %119 = vmatpush1.msra.mxu0 %v92
    %120 = vmatprep.subr.mxu0 0.0
    %121 = vmatpush1.msra.mxu0 %v93
    %122 = vmatprep.subr.mxu0 0.0
    %123 = vmatpush1.msra.mxu0 %v94
    %124 = vmatprep.subr.mxu0 0.0
    %125 = vmatpush1.msra.mxu0 %v95
    %126 = vmatprep.subr.mxu0 0.0
    %127 = vmatpush1.msra.mxu0 %v96
    %128 = vmatprep.subr.mxu0 0.0
    %129 = vmatpush1.msra.mxu0 %v97
    %130 = vmatprep.subr.mxu0 0.0
    %131 = vmatpush1.msra.mxu0 %v98
    %132 = vmatprep.subr.mxu0 0.0
    %133 = vmatpush1.msra.mxu0 %v99
    %134 = vmatprep.subr.mxu0 0.0
    %135 = vmatpush1.msra.mxu0 %v100
    %136 = vmatprep.subr.mxu0 0.0
    %137 = vmatpush1.msra.mxu0 %v101
    %138 = vmatprep.subr.mxu0 0.0
    %139 = vmatpush1.msra.mxu0 %v102
    %140 = vmatprep.subr.mxu0 0.0
    %141 = vmatpush1.msra.mxu0 %v103
    %142 = vmatprep.subr.mxu0 0.0
    %143 = vmatpush1.msra.mxu0 %v104
    %144 = vmatprep.subr.mxu0 0.0
    %145 = vmatpush1.msra.mxu0 0.0
    %146 = vmatprep.subr.mxu0 0.0
    %147 = vmatpush1.msra.mxu0 0.0
    %148 = vmatprep.subr.mxu0 0.0
    %149 = vmatpush1.msra.mxu0 0.0
    %150 = vmatprep.subr.mxu0 0.0
    %151 = vmatpush1.msra.mxu0 0.0
    %152 = vmatprep.subr.mxu0 0.0
    %153 = vmatpush1.msra.mxu0 0.0
    %154 = vmatprep.subr.mxu0 0.0
    %155 = vmatpush1.msra.mxu0 0.0
    %156 = vmatprep.subr.mxu0 0.0
    %157 = vmatpush1.msra.mxu0 0.0
    %158 = vmatprep.subr.mxu0 0.0
    %159 = vmatpush1.msra.mxu0 0.0
    %160 = vmatprep.subr.mxu0 0.0
    %161 = vmatpush1.msra.mxu0 0.0
    %162 = vmatprep.subr.mxu0 0.0
    %163 = vmatpush1.msra.mxu0 0.0
    %164 = vmatprep.subr.mxu0 0.0
    %165 = vmatpush1.msra.mxu0 0.0
    %166 = vmatprep.subr.mxu0 0.0
    %167 = vmatpush1.msra.mxu0 0.0
    %168 = vmatprep.subr.mxu0 0.0
    %169 = vmatpush1.msra.mxu0 0.0
    %170 = vmatprep.subr.mxu0 0.0
    %171 = vmatpush1.msra.mxu0 0.0
    %172 = vmatprep.subr.mxu0 0.0
    %173 = vmatpush1.msra.mxu0 0.0
    %174 = vmatprep.subr.mxu0 0.0
    %175 = vmatpush1.msra.mxu0 0.0
    %176 = vmatprep.mubr.f32.mxu0 0.0
    %177 = vmatmul.mubr.f32.gmra.mrb[0].mxu0 %v88
    %v178 = vpop.f32.mrb[0].mxu0
    %v179 = vadd.f32 %v110, %v178
    %v180 = vpop.f32.mrb[0].mxu0
    %181 = vdwg.mxu0
    %v182 = vmax.f32 %v179, 0.0
    %v183 = vld [vmem:[#allocation5] sm:$0xff]
    %v184 = vld [vmem:[#allocation5 + $0x8] sm:$0xff]
    %v185 = vld [vmem:[#allocation5 + $0x10] sm:$0xff]
    %v186 = vld [vmem:[#allocation5 + $0x18] sm:$0xff]
    %v187 = vld [vmem:[#allocation5 + $0x20] sm:$0xff]
    %v188 = vld [vmem:[#allocation5 + $0x28] sm:$0xff]
    %v189 = vld [vmem:[#allocation5 + $0x30] sm:$0xff]
    %v190 = vld [vmem:[#allocation5 + $0x38] sm:$0xff]
    %v191 = vld [vmem:[#allocation5 + $0x40] sm:$0xff]
    %v192 = vld [vmem:[#allocation5 + $0x48] sm:$0xff]
    %v193 = vld [vmem:[#allocation5 + $0x50] sm:$0xff]
    %v194 = vld [vmem:[#allocation5 + $0x58] sm:$0xff]
    %v195 = vld [vmem:[#allocation5 + $0x60] sm:$0xff]
    %v196 = vld [vmem:[#allocation5 + $0x68] sm:$0xff]
    %v197 = vld [vmem:[#allocation5 + $0x70] sm:$0xff]
    %v198 = vld [vmem:[#allocation5 + $0x78] sm:$0xff]
    %v199 = vld [vmem:[%s6] sm:$0x1]
    %v201 = vlaneseq
    %v202 = vshrl.u32 %v201, 7
    %v203 = vsub.s32 0, %v202
    %v204 = vrot.slane %v199, %v203
    %206 = vmatprep.subr.mxu0 0.0
    %207 = vmatpush1.msra.mxu0 %v183
    %208 = vmatprep.subr.mxu0 0.0
    %209 = vmatpush1.msra.mxu0 %v184
    %210 = vmatprep.subr.mxu0 0.0
    %211 = vmatpush1.msra.mxu0 %v185
    %212 = vmatprep.subr.mxu0 0.0
    %213 = vmatpush1.msra.mxu0 %v186
    %214 = vmatprep.subr.mxu0 0.0
    %215 = vmatpush1.msra.mxu0 %v187
    %216 = vmatprep.subr.mxu0 0.0
    %217 = vmatpush1.msra.mxu0 %v188
    %218 = vmatprep.subr.mxu0 0.0
    %219 = vmatpush1.msra.mxu0 %v189
    %220 = vmatprep.subr.mxu0 0.0
    %221 = vmatpush1.msra.mxu0 %v190
    %222 = vmatprep.subr.mxu0 0.0
    %223 = vmatpush1.msra.mxu0 %v191
    %224 = vmatprep.subr.mxu0 0.0
    %225 = vmatpush1.msra.mxu0 %v192
    %226 = vmatprep.subr.mxu0 0.0
    %227 = vmatpush1.msra.mxu0 %v193
    %228 = vmatprep.subr.mxu0 0.0
    %229 = vmatpush1.msra.mxu0 %v194
    %230 = vmatprep.subr.mxu0 0.0
    %231 = vmatpush1.msra.mxu0 %v195
    %232 = vmatprep.subr.mxu0 0.0
    %233 = vmatpush1.msra.mxu0 %v196
    %234 = vmatprep.subr.mxu0 0.0
    %235 = vmatpush1.msra.mxu0 %v197
    %236 = vmatprep.subr.mxu0 0.0
    %237 = vmatpush1.msra.mxu0 %v198
    %238 = vmatprep.subr.mxu0 0.0
    %239 = vmatpush1.msra.mxu0 0.0
    %240 = vmatprep.subr.mxu0 0.0
    %241 = vmatpush1.msra.mxu0 0.0
    %242 = vmatprep.subr.mxu0 0.0
    %243 = vmatpush1.msra.mxu0 0.0
    %244 = vmatprep.subr.mxu0 0.0
    %245 = vmatpush1.msra.mxu0 0.0
    %246 = vmatprep.subr.mxu0 0.0
    %247 = vmatpush1.msra.mxu0 0.0
    %248 = vmatprep.subr.mxu0 0.0
    %249 = vmatpush1.msra.mxu0 0.0
    %250 = vmatprep.subr.mxu0 0.0
    %251 = vmatpush1.msra.mxu0 0.0
    %252 = vmatprep.subr.mxu0 0.0
    %253 = vmatpush1.msra.mxu0 0.0
    %254 = vmatprep.subr.mxu0 0.0
    %255 = vmatpush1.msra.mxu0 0.0
    %256 = vmatprep.subr.mxu0 0.0
    %257 = vmatpush1.msra.mxu0 0.0
    %258 = vmatprep.subr.mxu0 0.0
    %259 = vmatpush1.msra.mxu0 0.0
    %260 = vmatprep.subr.mxu0 0.0
    %261 = vmatpush1.msra.mxu0 0.0
    %262 = vmatprep.subr.mxu0 0.0
    %263 = vmatpush1.msra.mxu0 0.0
    %264 = vmatprep.subr.mxu0 0.0
    %265 = vmatpush1.msra.mxu0 0.0
    %266 = vmatprep.subr.mxu0 0.0
    %267 = vmatpush1.msra.mxu0 0.0
    %268 = vmatprep.subr.mxu0 0.0
    %269 = vmatpush1.msra.mxu0 0.0
    %270 = vmatprep.mubr.f32.mxu0 0.0
    %271 = vmatmul.mubr.f32.gmra.mrb[0].mxu0 %v182
    %v272 = vpop.f32.mrb[0].mxu0
    %v273 = vadd.f32 %v204, %v272
    %v274 = vpop.f32.mrb[0].mxu0
    %275 = vdwg.mxu0
    %v276 = vmax.f32 %v273, 0.0
    %v277 = vld [vmem:[#allocation7] sm:$0xff]
    %v278 = vld [vmem:[#allocation7 + $0x8] sm:$0xff]
    %v279 = vld [vmem:[#allocation7 + $0x10] sm:$0xff]
    %v280 = vld [vmem:[#allocation7 + $0x18] sm:$0xff]
    %v281 = vld [vmem:[#allocation7 + $0x20] sm:$0xff]
    %v282 = vld [vmem:[#allocation7 + $0x28] sm:$0xff]
    %v283 = vld [vmem:[#allocation7 + $0x30] sm:$0xff]
    %v284 = vld [vmem:[#allocation7 + $0x38] sm:$0xff]
    %v285 = vld [vmem:[#allocation7 + $0x40] sm:$0xff]
    %v286 = vld [vmem:[#allocation7 + $0x48] sm:$0xff]
    %v287 = vld [vmem:[#allocation7 + $0x50] sm:$0xff]
    %v288 = vld [vmem:[#allocation7 + $0x58] sm:$0xff]
    %v289 = vld [vmem:[#allocation7 + $0x60] sm:$0xff]
    %v290 = vld [vmem:[#allocation7 + $0x68] sm:$0xff]
    %v291 = vld [vmem:[#allocation7 + $0x70] sm:$0xff]
    %v292 = vld [vmem:[#allocation7 + $0x78] sm:$0xff]
    %v293 = vld [vmem:[%s7] sm:$0x1]
    %v295 = vlaneseq
    %v296 = vshrl.u32 %v295, 7
    %v297 = vsub.s32 0, %v296
    %v298 = vrot.slane %v293, %v297
    %300 = vmatprep.subr.mxu0 0.0
    %301 = vmatpush1.msra.mxu0 %v277
    %302 = vmatprep.subr.mxu0 0.0
    %303 = vmatpush1.msra.mxu0 %v278
    %304 = vmatprep.subr.mxu0 0.0
    %305 = vmatpush1.msra.mxu0 %v279
    %306 = vmatprep.subr.mxu0 0.0
    %307 = vmatpush1.msra.mxu0 %v280
    %308 = vmatprep.subr.mxu0 0.0
    %309 = vmatpush1.msra.mxu0 %v281
    %310 = vmatprep.subr.mxu0 0.0
    %311 = vmatpush1.msra.mxu0 %v282
    %312 = vmatprep.subr.mxu0 0.0
    %313 = vmatpush1.msra.mxu0 %v283
    %314 = vmatprep.subr.mxu0 0.0
    %315 = vmatpush1.msra.mxu0 %v284
    %316 = vmatprep.subr.mxu0 0.0
    %317 = vmatpush1.msra.mxu0 %v285
    %318 = vmatprep.subr.mxu0 0.0
    %319 = vmatpush1.msra.mxu0 %v286
    %320 = vmatprep.subr.mxu0 0.0
    %321 = vmatpush1.msra.mxu0 %v287
    %322 = vmatprep.subr.mxu0 0.0
    %323 = vmatpush1.msra.mxu0 %v288
    %324 = vmatprep.subr.mxu0 0.0
    %325 = vmatpush1.msra.mxu0 %v289
    %326 = vmatprep.subr.mxu0 0.0
    %327 = vmatpush1.msra.mxu0 %v290
    %328 = vmatprep.subr.mxu0 0.0
    %329 = vmatpush1.msra.mxu0 %v291
    %330 = vmatprep.subr.mxu0 0.0
    %331 = vmatpush1.msra.mxu0 %v292
    %332 = vmatprep.subr.mxu0 0.0
    %333 = vmatpush1.msra.mxu0 0.0
    %334 = vmatprep.subr.mxu0 0.0
    %335 = vmatpush1.msra.mxu0 0.0
    %336 = vmatprep.subr.mxu0 0.0
    %337 = vmatpush1.msra.mxu0 0.0
    %338 = vmatprep.subr.mxu0 0.0
    %339 = vmatpush1.msra.mxu0 0.0
    %340 = vmatprep.subr.mxu0 0.0
    %341 = vmatpush1.msra.mxu0 0.0
    %342 = vmatprep.subr.mxu0 0.0
    %343 = vmatpush1.msra.mxu0 0.0
    %344 = vmatprep.subr.mxu0 0.0
    %345 = vmatpush1.msra.mxu0 0.0
    %346 = vmatprep.subr.mxu0 0.0
    %347 = vmatpush1.msra.mxu0 0.0
    %348 = vmatprep.subr.mxu0 0.0
    %349 = vmatpush1.msra.mxu0 0.0
    %350 = vmatprep.subr.mxu0 0.0
    %351 = vmatpush1.msra.mxu0 0.0
    %352 = vmatprep.subr.mxu0 0.0
    %353 = vmatpush1.msra.mxu0 0.0
    %354 = vmatprep.subr.mxu0 0.0
    %355 = vmatpush1.msra.mxu0 0.0
    %356 = vmatprep.subr.mxu0 0.0
    %357 = vmatpush1.msra.mxu0 0.0
    %358 = vmatprep.subr.mxu0 0.0
    %359 = vmatpush1.msra.mxu0 0.0
    %360 = vmatprep.subr.mxu0 0.0
    %361 = vmatpush1.msra.mxu0 0.0
    %362 = vmatprep.subr.mxu0 0.0
    %363 = vmatpush1.msra.mxu0 0.0
    %364 = vmatprep.mubr.f32.mxu0 0.0
    %365 = vmatmul.mubr.f32.gmra.mrb[0].mxu0 %v276
    %v366 = vpop.f32.mrb[0].mxu0
    %v367 = vadd.f32 %v298, %v366
    %v368 = vpop.f32.mrb[0].mxu0
    %369 = vdwg.mxu0
    %v370 = vmax.f32 %v367, 0.0
    %v371 = vld [vmem:[#allocation8] sm:$0xff]
    %v372 = vld [vmem:[#allocation8 + $0x8] sm:$0xff]
    %v373 = vld [vmem:[#allocation8 + $0x10] sm:$0xff]
    %v374 = vld [vmem:[#allocation8 + $0x18] sm:$0xff]
    %v375 = vld [vmem:[#allocation8 + $0x20] sm:$0xff]
    %v376 = vld [vmem:[#allocation8 + $0x28] sm:$0xff]
    %v377 = vld [vmem:[#allocation8 + $0x30] sm:$0xff]
    %v378 = vld [vmem:[#allocation8 + $0x38] sm:$0xff]
    %v379 = vld [vmem:[#allocation8 + $0x40] sm:$0xff]
    %v380 = vld [vmem:[#allocation8 + $0x48] sm:$0xff]
    %v381 = vld [vmem:[#allocation8 + $0x50] sm:$0xff]
    %v382 = vld [vmem:[#allocation8 + $0x58] sm:$0xff]
    %v383 = vld [vmem:[#allocation8 + $0x60] sm:$0xff]
    %v384 = vld [vmem:[#allocation8 + $0x68] sm:$0xff]
    %v385 = vld [vmem:[#allocation8 + $0x70] sm:$0xff]
    %v386 = vld [vmem:[#allocation8 + $0x78] sm:$0xff]
    %v387 = vld [vmem:[%s8] sm:$0x1]
    %v389 = vlaneseq
    %v390 = vshrl.u32 %v389, 7
    %v391 = vsub.s32 0, %v390
    %v392 = vrot.slane %v387, %v391
    %394 = vmatprep.subr.mxu0 0.0
    %395 = vmatpush1.msra.mxu0 %v371
    %396 = vmatprep.subr.mxu0 0.0
    %397 = vmatpush1.msra.mxu0 %v372
    %398 = vmatprep.subr.mxu0 0.0
    %399 = vmatpush1.msra.mxu0 %v373
    %400 = vmatprep.subr.mxu0 0.0
    %401 = vmatpush1.msra.mxu0 %v374
    %402 = vmatprep.subr.mxu0 0.0
    %403 = vmatpush1.msra.mxu0 %v375
    %404 = vmatprep.subr.mxu0 0.0
    %405 = vmatpush1.msra.mxu0 %v376
    %406 = vmatprep.subr.mxu0 0.0
    %407 = vmatpush1.msra.mxu0 %v377
    %408 = vmatprep.subr.mxu0 0.0
    %409 = vmatpush1.msra.mxu0 %v378
    %410 = vmatprep.subr.mxu0 0.0
    %411 = vmatpush1.msra.mxu0 %v379
    %412 = vmatprep.subr.mxu0 0.0
    %413 = vmatpush1.msra.mxu0 %v380
    %414 = vmatprep.subr.mxu0 0.0
    %415 = vmatpush1.msra.mxu0 %v381
    %416 = vmatprep.subr.mxu0 0.0
    %417 = vmatpush1.msra.mxu0 %v382
    %418 = vmatprep.subr.mxu0 0.0
    %419 = vmatpush1.msra.mxu0 %v383
    %420 = vmatprep.subr.mxu0 0.0
    %421 = vmatpush1.msra.mxu0 %v384
    %422 = vmatprep.subr.mxu0 0.0
    %423 = vmatpush1.msra.mxu0 %v385
    %424 = vmatprep.subr.mxu0 0.0
    %425 = vmatpush1.msra.mxu0 %v386
    %426 = vmatprep.subr.mxu0 0.0
    %427 = vmatpush1.msra.mxu0 0.0
    %428 = vmatprep.subr.mxu0 0.0
    %429 = vmatpush1.msra.mxu0 0.0
    %430 = vmatprep.subr.mxu0 0.0
    %431 = vmatpush1.msra.mxu0 0.0
    %432 = vmatprep.subr.mxu0 0.0
    %433 = vmatpush1.msra.mxu0 0.0
    %434 = vmatprep.subr.mxu0 0.0
    %435 = vmatpush1.msra.mxu0 0.0
    %436 = vmatprep.subr.mxu0 0.0
    %437 = vmatpush1.msra.mxu0 0.0
    %438 = vmatprep.subr.mxu0 0.0
    %439 = vmatpush1.msra.mxu0 0.0
    %440 = vmatprep.subr.mxu0 0.0
    %441 = vmatpush1.msra.mxu0 0.0
    %442 = vmatprep.subr.mxu0 0.0
    %443 = vmatpush1.msra.mxu0 0.0
    %444 = vmatprep.subr.mxu0 0.0
    %445 = vmatpush1.msra.mxu0 0.0
    %446 = vmatprep.subr.mxu0 0.0
    %447 = vmatpush1.msra.mxu0 0.0
    %448 = vmatprep.subr.mxu0 0.0
    %449 = vmatpush1.msra.mxu0 0.0
    %450 = vmatprep.subr.mxu0 0.0
    %451 = vmatpush1.msra.mxu0 0.0
    %452 = vmatprep.subr.mxu0 0.0
    %453 = vmatpush1.msra.mxu0 0.0
    %454 = vmatprep.subr.mxu0 0.0
    %455 = vmatpush1.msra.mxu0 0.0
    %456 = vmatprep.subr.mxu0 0.0
    %457 = vmatpush1.msra.mxu0 0.0
    %458 = vmatprep.mubr.f32.mxu0 0.0
    %459 = vmatmul.mubr.f32.gmra.mrb[0].mxu0 %v370
    %v460 = vpop.f32.mrb[0].mxu0
    %v461 = vadd.f32 %v392, %v460
    %v462 = vpop.f32.mrb[0].mxu0
    %463 = vdwg.mxu0
    %464 = vst [vmem:[#allocation10] sm:$0xff] %v461
    // Predicated region
    $region54: #{ae_forward.1} parent=1 // pred_check
      _
    $region55: #{ae_forward.1} parent=1 // pred_check_branch
      %466 = sbr.rel (0) target = $region57
    $region56: #{ae_forward.1} parent=1 // pred_region
      %s468 = ssub.s32 128, 128
      %469 = vsyncadd [#allocation4], %s468
      %s471 = sshll.u32 [#allocation10], 4
      %s472 = int_to_ptr.vmem [resolvable:$true] %s471
      %474 = dma.vmem_to_hbm [thread:$0]  %s472, 128, %s9, [#allocation4]
    $region57: #{ae_forward.1} parent=1 // pred_fallthru
      _
    // Predicated region
    $region58: #{ae_forward.1} parent=1 // pred_check
      _
    $region59: #{ae_forward.1} parent=1 // pred_check_branch
      %476 = sbr.rel (0) target = $region61
    $region60: #{ae_forward.1} parent=1 // pred_region
      %477 = dma.done [#allocation4], 128
    $region61: #{ae_forward.1} parent=1 // pred_fallthru
      _
    %478 = vsyncpa [#allocation3], 1
    %479 = vsyncpa [#allocation6], 1
    %480 = vsyncpa [#allocation9], 1
    %481 = vsyncpa [#allocation4], 1

</llo_original>
